<compile_context>
chip_gen: v7x
topology: tpu7x:2x2x1
jax: 0.10.0
libtpu: 0.0.40
codegen_flags: <defaults>
</compile_context>

<pallas_src>
import functools

import jax
import jax.numpy as jnp
from jax import lax
from jax.experimental import pallas as pl
from jax.experimental.pallas import tpu as pltpu


def _round_up(n, m):
    return ((n + m - 1) // m) * m


def _domain_classifier_kernel(x_ref, p_ref, out_ref, *, d_in, hidden, n_cls):
    x = x_ref[...]                                   # [B, d_in] f32
    single = (x.shape[0] == 1)                       # static (trace-time) branch

    # ---- static slices into the packed parameter slab ----
    r_w2 = d_in
    r_b1 = d_in + hidden
    w1t = p_ref[0:d_in, 0:hidden]                    # [d_in, H]  (fc1.weight.T)
    w2t = p_ref[r_w2:r_w2 + hidden, 0:n_cls]         # [H, C]     (fc2.weight.T)
    b1 = p_ref[r_b1:r_b1 + 1, 0:hidden]              # [1, H]
    gamma = p_ref[r_b1 + 1:r_b1 + 2, 0:hidden]       # [1, H]
    beta = p_ref[r_b1 + 2:r_b1 + 3, 0:hidden]        # [1, H]
    b2 = p_ref[r_b1 + 3:r_b1 + 4, 0:n_cls]           # [1, C]

    # ---- fc1 on the MXU: bf16 operands, f32 accumulation ----
    h = jnp.dot(x.astype(jnp.bfloat16), w1t.astype(jnp.bfloat16),
                preferred_element_type=jnp.float32)
    h = h + jnp.broadcast_to(b1, h.shape)            # [B, H] f32

    if single:
        # PyTorch: out = out.repeat(2, 1) before train-mode BN; duplicate the row in VMEM.
        h = jnp.concatenate([h, h], axis=0)          # [2, H]

    bs = h.shape[0]

    # ---- BatchNorm1d (training-mode batch stats), one fused sublane reduction ----
    hh = jnp.concatenate([h, h * h], axis=1)                       # [bs, 2H] (2H <= 128 lanes)
    stats = jnp.sum(hh, axis=0, keepdims=True) * (1.0 / bs)        # [1, 2H]
    mean = stats[:, 0:hidden]
    mean_sq = stats[:, hidden:2 * hidden]
    var = jnp.maximum(mean_sq - mean * mean, 0.0)                  # clamp: cancellation guard
    s = gamma * lax.rsqrt(var + 1e-5)                              # [1, H] fused scale
    t = beta - mean * s                                            # [1, H] fused shift
    hn = h * jnp.broadcast_to(s, h.shape) + jnp.broadcast_to(t, h.shape)

    # ---- ReLU (f32 on VPU) ----
    hr = jnp.maximum(hn, 0.0)

    # ---- fc2 on the MXU: bf16 operands, f32 accumulation ----
    z = jnp.dot(hr.astype(jnp.bfloat16), w2t.astype(jnp.bfloat16),
                preferred_element_type=jnp.float32)
    z = z + jnp.broadcast_to(b2, z.shape)                          # [bs, C]

    # ---- log_softmax along dim=1 (max-stabilized, f32) ----
    m = jnp.max(z, axis=1, keepdims=True)
    lse = jnp.log(jnp.sum(jnp.exp(z - m), axis=1, keepdims=True)) + m
    out = z - lse

    out_ref[...] = out[0:1, :] if single else out


def _pack_params(w1, b1, gamma, beta, w2, b2):
    """Pack all parameters into one pre-padded, lane-aligned f32 slab.

    Row layout:  [0 : D_in)            w1.T  (lanes 0:H)
                 [D_in : D_in+H)       w2.T  (lanes 0:C)
                 D_in+H                b1    (lanes 0:H)
                 D_in+H+1              gamma (lanes 0:H)
                 D_in+H+2              beta  (lanes 0:H)
                 D_in+H+3              b2    (lanes 0:C)
    """
    hidden, d_in = w1.shape
    n_cls = w2.shape[0]
    rows = _round_up(d_in + hidden + 4, 8)
    lanes = _round_up(max(hidden, n_cls), 128)
    slab = jnp.zeros((rows, lanes), jnp.float32)
    slab = slab.at[0:d_in, 0:hidden].set(w1.T)
    slab = slab.at[d_in:d_in + hidden, 0:n_cls].set(w2.T)
    slab = slab.at[d_in + hidden, 0:hidden].set(b1)
    slab = slab.at[d_in + hidden + 1, 0:hidden].set(gamma)
    slab = slab.at[d_in + hidden + 2, 0:hidden].set(beta)
    slab = slab.at[d_in + hidden + 3, 0:n_cls].set(b2)
    return slab


def init_params(key, input_size, hidden_size, num_classes):
    """Deterministic synthetic parameters in PyTorch shapes + kernel-ready packed slab."""
    k1, k2, k3, k4 = jax.random.split(key, 4)
    w1 = jax.random.normal(k1, (hidden_size, input_size), jnp.float32) * 0.1   # fc1.weight [out,in]
    b1 = jax.random.normal(k2, (hidden_size,), jnp.float32) * 0.1              # fc1.bias
    w2 = jax.random.normal(k3, (num_classes, hidden_size), jnp.float32) * 0.1  # fc2.weight [out,in]
    b2 = jax.random.normal(k4, (num_classes,), jnp.float32) * 0.1              # fc2.bias
    gamma = jnp.ones((hidden_size,), jnp.float32)                              # bn1.weight
    beta = jnp.zeros((hidden_size,), jnp.float32)                              # bn1.bias
    return dict(
        # PyTorch-layout originals (used by the pure-JAX reference)
        w1=w1, b1=b1, gamma=gamma, beta=beta, w2=w2, b2=b2,
        # Single packed, lane-aligned parameter slab (built once at init)
        slab=_pack_params(w1, b1, gamma, beta, w2, b2),
    )


def domain_classifier_forward(x, params):
    """Mirrors DomainClassifier.forward, including the batch==1 repeat(2,1) path."""
    single = (x.shape[0] == 1)
    d_in = x.shape[1]
    hidden = params["w1"].shape[0]
    n_cls = params["w2"].shape[0]
    out_rows = 1 if single else x.shape[0]

    kernel = functools.partial(_domain_classifier_kernel,
                               d_in=d_in, hidden=hidden, n_cls=n_cls)
    vmem = pl.BlockSpec(memory_space=pltpu.MemorySpace.VMEM)
    out = pl.pallas_call(
        kernel,
        out_shape=jax.ShapeDtypeStruct((out_rows, n_cls), jnp.float32),
        in_specs=[vmem, vmem],
        out_specs=vmem,
    )(x, params["slab"])
    # Only a trivial size-1 squeeze remains in the wrapper for the single-sample path.
    return out[0] if single else out


def _reference(x, p):
    """Pure-JAX reference (mirrors the kernel's bf16 MXU casts, f32 elementwise)."""
    bf = jnp.bfloat16
    single = (x.shape[0] == 1)
    h = jnp.dot(x.astype(bf), p["w1"].T.astype(bf),
                preferred_element_type=jnp.float32) + p["b1"]
    if single:
        h = jnp.concatenate([h, h], axis=0)
    mean = jnp.mean(h, axis=0, keepdims=True)
    var = jnp.mean((h - mean) ** 2, axis=0, keepdims=True)
    hn = (h - mean) / jnp.sqrt(var + 1e-5) * p["gamma"] + p["beta"]
    hr = jnp.maximum(hn, 0.0)
    z = jnp.dot(hr.astype(bf), p["w2"].T.astype(bf),
                preferred_element_type=jnp.float32) + p["b2"]
    ls = z - jax.scipy.special.logsumexp(z, axis=1, keepdims=True)
    return ls[0] if single else ls


if __name__ == "__main__":
    key = jax.random.PRNGKey(0)
    k_x, k_p, k_x1 = jax.random.split(key, 3)

    input_size, hidden_size, num_classes = 32, 32, 8
    params = init_params(k_p, input_size, hidden_size, num_classes)

    # Batched path (B > 1)
    x = jax.random.normal(k_x, (4, input_size), jnp.float32)
    out = jax.block_until_ready(domain_classifier_forward(x, params))
    ref = _reference(x, params)
    assert out.shape == (4, num_classes)
    assert jnp.allclose(out, ref, atol=1e-3, rtol=1e-4), "batched path mismatch"

    # Single-sample path (B == 1, exercises the repeat(2,1) branch inside the kernel)
    x1 = jax.random.normal(k_x1, (1, input_size), jnp.float32)
    out1 = jax.block_until_ready(domain_classifier_forward(x1, params))
    ref1 = _reference(x1, params)
    assert out1.shape == (num_classes,)
    assert jnp.allclose(out1, ref1, atol=1e-3, rtol=1e-4), "single-sample path mismatch"

    print("KERNEL_OK")
</pallas_src>

<mosaic_0001>
module attributes {stable_mosaic.version = 11 : i64} {
  func.func @_domain_classifier_kernel(%arg0: memref<4x32xf32, #tpu.memory_space<vmem>>, %arg1: memref<72x128xf32, #tpu.memory_space<vmem>>, %arg2: memref<4x8xf32, #tpu.memory_space<vmem>>) attributes {dimension_semantics = [], scalar_prefetch = 0 : i64, scratch_operands = 0 : i64, tpu.core_type = #tpu.core_type<tc>} {
    %c0 = arith.constant 0 : index
    %c0_0 = arith.constant 0 : index
    %0 = vector.load %arg0[%c0, %c0_0] : memref<4x32xf32, #tpu.memory_space<vmem>>, vector<4x32xf32>
    %c0_1 = arith.constant 0 : index
    %c0_2 = arith.constant 0 : index
    %1 = vector.load %arg1[%c0_1, %c0_2] : memref<72x128xf32, #tpu.memory_space<vmem>>, vector<32x32xf32>
    %c32 = arith.constant 32 : index
    %c0_3 = arith.constant 0 : index
    %2 = vector.load %arg1[%c32, %c0_3] : memref<72x128xf32, #tpu.memory_space<vmem>>, vector<32x8xf32>
    %c64 = arith.constant 64 : index
    %c0_4 = arith.constant 0 : index
    %3 = vector.load %arg1[%c64, %c0_4] : memref<72x128xf32, #tpu.memory_space<vmem>>, vector<1x32xf32>
    %c65 = arith.constant 65 : index
    %c0_5 = arith.constant 0 : index
    %4 = vector.load %arg1[%c65, %c0_5] : memref<72x128xf32, #tpu.memory_space<vmem>>, vector<1x32xf32>
    %c66 = arith.constant 66 : index
    %c0_6 = arith.constant 0 : index
    %5 = vector.load %arg1[%c66, %c0_6] : memref<72x128xf32, #tpu.memory_space<vmem>>, vector<1x32xf32>
    %c67 = arith.constant 67 : index
    %c0_7 = arith.constant 0 : index
    %6 = vector.load %arg1[%c67, %c0_7] : memref<72x128xf32, #tpu.memory_space<vmem>>, vector<1x8xf32>
    %7 = arith.truncf %0 : vector<4x32xf32> to vector<4x32xbf16>
    %8 = arith.truncf %1 : vector<32x32xf32> to vector<32x32xbf16>
    %cst = arith.constant dense<0.000000e+00> : vector<4x32xf32>
    %9 = tpu.matmul %7, %8, %cst {dimension_numbers = #tpu.dot_dimension_numbers<[1], [0], [0], [1], [0, 0, 1, 1], [], []>} : vector<4x32xbf16>, vector<32x32xbf16>, vector<4x32xf32> -> vector<4x32xf32>
    %10 = vector.shape_cast %3 : vector<1x32xf32> to vector<1x32xf32>
    %11 = vector.broadcast %10 : vector<1x32xf32> to vector<4x32xf32>
    %12 = arith.addf %9, %11 : vector<4x32xf32>
    %13 = arith.mulf %12, %12 : vector<4x32xf32>
    %14 = tpu.concatenate %12, %13 in 1 : vector<4x32xf32>, vector<4x32xf32> -> vector<4x64xf32>
    %cst_8 = arith.constant dense<0.000000e+00> : vector<64xf32>
    %15 = vector.multi_reduction <add>, %14, %cst_8 [0] : vector<4x64xf32> to vector<64xf32>
    %16 = vector.shape_cast %15 : vector<64xf32> to vector<1x64xf32>
    %cst_9 = arith.constant 2.500000e-01 : f32
    %17 = vector.broadcast %cst_9 : f32 to vector<1x64xf32>
    %18 = arith.mulf %16, %17 : vector<1x64xf32>
    %19 = vector.extract_strided_slice %18 {offsets = [0, 0], sizes = [1, 32], strides = [1, 1]} : vector<1x64xf32> to vector<1x32xf32>
    %20 = vector.extract_strided_slice %18 {offsets = [0, 32], sizes = [1, 32], strides = [1, 1]} : vector<1x64xf32> to vector<1x32xf32>
    %21 = arith.mulf %19, %19 : vector<1x32xf32>
    %22 = arith.subf %20, %21 : vector<1x32xf32>
    %cst_10 = arith.constant 0.000000e+00 : f32
    %23 = vector.broadcast %cst_10 : f32 to vector<1x32xf32>
    %24 = arith.maximumf %22, %23 : vector<1x32xf32>
    %cst_11 = arith.constant 9.99999974E-6 : f32
    %25 = vector.broadcast %cst_11 : f32 to vector<1x32xf32>
    %26 = arith.addf %24, %25 : vector<1x32xf32>
    %27 = math.rsqrt %26 : vector<1x32xf32>
    %28 = arith.mulf %4, %27 : vector<1x32xf32>
    %29 = arith.mulf %19, %28 : vector<1x32xf32>
    %30 = arith.subf %5, %29 : vector<1x32xf32>
    %31 = vector.shape_cast %28 : vector<1x32xf32> to vector<1x32xf32>
    %32 = vector.broadcast %31 : vector<1x32xf32> to vector<4x32xf32>
    %33 = arith.mulf %12, %32 : vector<4x32xf32>
    %34 = vector.shape_cast %30 : vector<1x32xf32> to vector<1x32xf32>
    %35 = vector.broadcast %34 : vector<1x32xf32> to vector<4x32xf32>
    %36 = arith.addf %33, %35 : vector<4x32xf32>
    %cst_12 = arith.constant 0.000000e+00 : f32
    %37 = vector.broadcast %cst_12 : f32 to vector<4x32xf32>
    %38 = arith.maximumf %36, %37 : vector<4x32xf32>
    %39 = arith.truncf %38 : vector<4x32xf32> to vector<4x32xbf16>
    %40 = arith.truncf %2 : vector<32x8xf32> to vector<32x8xbf16>
    %cst_13 = arith.constant dense<0.000000e+00> : vector<4x8xf32>
    %41 = tpu.matmul %39, %40, %cst_13 {dimension_numbers = #tpu.dot_dimension_numbers<[1], [0], [0], [1], [0, 0, 1, 1], [], []>} : vector<4x32xbf16>, vector<32x8xbf16>, vector<4x8xf32> -> vector<4x8xf32>
    %42 = vector.shape_cast %6 : vector<1x8xf32> to vector<1x8xf32>
    %43 = vector.broadcast %42 : vector<1x8xf32> to vector<4x8xf32>
    %44 = arith.addf %41, %43 : vector<4x8xf32>
    %cst_14 = arith.constant dense<0xFF800000> : vector<4xf32>
    %45 = vector.multi_reduction <maximumf>, %44, %cst_14 [1] : vector<4x8xf32> to vector<4xf32>
    %46 = vector.shape_cast %45 : vector<4xf32> to vector<4x1xf32>
    %47 = vector.broadcast %46 : vector<4x1xf32> to vector<4x8xf32>
    %48 = arith.subf %44, %47 : vector<4x8xf32>
    %49 = math.exp %48 : vector<4x8xf32>
    %cst_15 = arith.constant dense<0.000000e+00> : vector<4xf32>
    %50 = vector.multi_reduction <add>, %49, %cst_15 [1] : vector<4x8xf32> to vector<4xf32>
    %51 = vector.shape_cast %50 : vector<4xf32> to vector<4x1xf32>
    %52 = math.log %51 : vector<4x1xf32>
    %53 = arith.addf %52, %46 : vector<4x1xf32>
    %54 = vector.broadcast %53 : vector<4x1xf32> to vector<4x8xf32>
    %55 = arith.subf %44, %54 : vector<4x8xf32>
    %c0_16 = arith.constant 0 : index
    %c0_17 = arith.constant 0 : index
    %56 = vector.load %arg2[%c0_16, %c0_17] : memref<4x8xf32, #tpu.memory_space<vmem>>, vector<4x8xf32>
    tpu.vector_store %arg2[%c0_16, %c0_17], %55 {strides = array<i32>} : memref<4x8xf32, #tpu.memory_space<vmem>>, vector<4x8xf32>,
    return
  }
}

</mosaic_0001>

<llo_original>
// kernel: tpu_custom_call.1
$region0: #{tpu_custom_call.1}
  #allocation0 [shape = 'u32[]', space=smem, size = 0x4, offset = 0x4, fixed_abs, tag = 'smem constant byte address 0x4 - core index']
  #allocation1 [shape = 'u32[144,128]{1,0:T(1,128)}', space=vmem, size = 0x12000, scoped, tag = 'internal scratch']
  %s0 = inlined_call_operand.hbm [shape: f32[4,32], index: 0, kind: input, shape index: {}]
  %s1 = inlined_call_operand.hbm [shape: f32[72,128], index: 1, kind: input, shape index: {}]
  %s2 = inlined_call_operand.hbm [shape: f32[4,8], index: 2, kind: output, shape index: {}]
  %s3 = sld [smem:[#allocation0]]
  $region26: #{tpu_custom_call.1} parent=0
    _
  %s5 = ssub.s32 1, %s3
  %s6 = scalar_select 0, %s5, %s3
  $region1: #{tpu_custom_call.1} parent=0
    #allocation2 [shape = 'u8[2048]{0}', space=vmem, size = 0x800, scoped, tag = 'input window, operand 0, single buffered']
    #allocation3 [shape = 's32[1]{0}', space=sflag, size = 0x4, scoped, tag = 'scoped memory for tpu_custom_call.1']
    #allocation4 [shape = 's32[1]{0}', space=sflag, size = 0x4, scoped, tag = 'scoped memory for tpu_custom_call.1']
    #allocation5 [shape = 'u8[36864]{0}', space=vmem, size = 0x9000, scoped, tag = 'input window, operand 1, single buffered']
    #allocation6 [shape = 's32[1]{0}', space=sflag, size = 0x4, scoped, tag = 'scoped memory for tpu_custom_call.1']
    #allocation7 [shape = 'u8[2048]{0}', space=vmem, size = 0x800, scoped, tag = 'output window, operand 0, single buffered']
    %7 = vsyncpa [#allocation3], 0
    %8 = vsyncpa [#allocation6], 0
    %9 = vsyncpa [#allocation4], 0
    // Predicated region
    $region2: #{tpu_custom_call.1} parent=1 // pred_check
      _
    $region3: #{tpu_custom_call.1} parent=1 // pred_check_branch
      %11 = sbr.rel (0) target = $region5
    $region4: #{tpu_custom_call.1} parent=1 // pred_region
      %s13 = ssub.s32 64, 64
      %14 = vsyncadd [#allocation3], %s13
      %s16 = sshll.u32 [#allocation2], 4
      %s17 = int_to_ptr.vmem [resolvable:$true] %s16
      %19 = dma.hbm_to_vmem [thread:$0]  %s0, 64, %s17, [#allocation3]
    $region5: #{tpu_custom_call.1} parent=1 // pred_fallthru
      _
    // Predicated region
    $region6: #{tpu_custom_call.1} parent=1 // pred_check
      _
    $region7: #{tpu_custom_call.1} parent=1 // pred_check_branch
      %21 = sbr.rel (0) target = $region9
    $region8: #{tpu_custom_call.1} parent=1 // pred_region
      %s23 = ssub.s32 1152, 1152
      %24 = vsyncadd [#allocation6], %s23
      %s25 = sshll.u32 [#allocation5], 4
      %s26 = int_to_ptr.vmem [resolvable:$true] %s25
      %31 = dma.hbm_to_vmem [thread:$0]  %s1, 1152, %s26, [#allocation6], 128, 128, 8
    $region9: #{tpu_custom_call.1} parent=1 // pred_fallthru
      _
    // Predicated region
    $region10: #{tpu_custom_call.1} parent=1 // pred_check
      _
    $region11: #{tpu_custom_call.1} parent=1 // pred_check_branch
      %33 = sbr.rel (0) target = $region13
    $region12: #{tpu_custom_call.1} parent=1 // pred_region
      %34 = dma.done [#allocation3], 64
    $region13: #{tpu_custom_call.1} parent=1 // pred_fallthru
      _
    // Predicated region
    $region14: #{tpu_custom_call.1} parent=1 // pred_check
      _
    $region15: #{tpu_custom_call.1} parent=1 // pred_check_branch
      %36 = sbr.rel (0) target = $region17
    $region16: #{tpu_custom_call.1} parent=1 // pred_region
      %37 = dma.done [#allocation6], 1152
    $region17: #{tpu_custom_call.1} parent=1 // pred_fallthru
      _
    %v39 = vld [vmem:[#allocation2] sm:$0xf]
    %v40 = vld [vmem:[#allocation5] sm:$0xff]
    %v41 = vld [vmem:[#allocation5 + $0x8] sm:$0xff]
    %v42 = vld [vmem:[#allocation5 + $0x10] sm:$0xff]
    %v43 = vld [vmem:[#allocation5 + $0x18] sm:$0xff]
    %v44 = vld [vmem:[#allocation5 + $0x20] sm:$0xff]
    %v45 = vld [vmem:[#allocation5 + $0x28] sm:$0xff]
    %v46 = vld [vmem:[#allocation5 + $0x30] sm:$0xff]
    %v47 = vld [vmem:[#allocation5 + $0x38] sm:$0xff]
    %v48 = vld [vmem:[#allocation5 + $0x40] sm:$0x1]
    %v49 = vld [vmem:[#allocation5 + $0x41] sm:$0x1]
    %v50 = vld [vmem:[#allocation5 + $0x42] sm:$0x1]
    %v51 = vld [vmem:[#allocation5 + $0x43] sm:$0x1]
    %v52 = vpack.c.bf16 %v39, %v39
    %v53 = vpack.c.bf16 %v41, %v40
    %v54 = vpack.c.bf16 %v43, %v42
    %v55 = vlaneseq
    %v56 = vshrl.u32 %v55, 7
    %v57 = vsub.s32 0, %v56
    %v58 = vrot.slane %v48, %v57
    %vm59 = vcmask 261120
    %v61 = vsel %vm59, %v52, 0
    %63 = vmatprep.subr.bf16.mxu0 0
    %64 = vmatpush1.bf16.msra.mxu0 %v53
    %65 = vmatprep.subr.bf16.mxu0 0
    %66 = vmatpush1.bf16.msra.mxu0 %v54
    %67 = vmatprep.subr.bf16.mxu0 0
    %68 = vmatpush1.bf16.msra.mxu0 0
    %69 = vmatprep.subr.bf16.mxu0 0
    %70 = vmatpush1.bf16.msra.mxu0 0
    %71 = vmatprep.subr.bf16.mxu0 0
    %72 = vmatpush1.bf16.msra.mxu0 0
    %73 = vmatprep.subr.bf16.mxu0 0
    %74 = vmatpush1.bf16.msra.mxu0 0
    %75 = vmatprep.subr.bf16.mxu0 0
    %76 = vmatpush1.bf16.msra.mxu0 0
    %77 = vmatprep.subr.bf16.mxu0 0
    %78 = vmatpush1.bf16.msra.mxu0 0
    %79 = vmatprep.subr.bf16.mxu0 0
    %80 = vmatpush1.bf16.msra.mxu0 0
    %81 = vmatprep.subr.bf16.mxu0 0
    %82 = vmatpush1.bf16.msra.mxu0 0
    %83 = vmatprep.subr.bf16.mxu0 0
    %84 = vmatpush1.bf16.msra.mxu0 0
    %85 = vmatprep.subr.bf16.mxu0 0
    %86 = vmatpush1.bf16.msra.mxu0 0
    %87 = vmatprep.subr.bf16.mxu0 0
    %88 = vmatpush1.bf16.msra.mxu0 0
    %89 = vmatprep.subr.bf16.mxu0 0
    %90 = vmatpush1.bf16.msra.mxu0 0
    %91 = vmatprep.subr.bf16.mxu0 0
    %92 = vmatpush1.bf16.msra.mxu0 0
    %93 = vmatprep.subr.bf16.mxu0 0
    %94 = vmatpush1.bf16.msra.mxu0 0
    %95 = vmatprep.mubr.bf16.mxu0 0
    %96 = vmatmul.mubr.bf16.gmra.mrb[0].mxu0 %v61
    %v97 = vpop.f32.mrb[0].mxu0
    %v98 = vadd.f32 %v58, %v97
    %v99 = vpop.f32.mrb[0].mxu0
    %v100 = vpop.f32.mrb[0].mxu0
    %v101 = vpop.f32.mrb[0].mxu0
    %102 = vdwg.mxu0
    %v103 = vmul.f32 %v98, %v98
    %105 = vrot.lane.b32.xlu0 %v103, 32
    %v106 = vpop.permute.xlu0 %105
    %v108 = vsel %vm59, %v98, %v106
    %vm109 = vcmask 519168
    %v110 = vsel %vm109, %v108, 0.0
    %v111 = vrot.slane %v110, 4
    %v112 = vadd.f32 %v110, %v111
    %v113 = vrot.slane %v112, 2
    %v114 = vadd.f32 %v112, %v113
    %v115 = vrot.slane %v114, 1
    %v116 = vadd.f32 %v114, %v115
    %v117 = vmul.f32 %v116, 0.25
    %v118 = vmul.f32 %v117, %v117
    %120 = vrot.lane.b32.xlu0 %v118, 32
    %v121 = vpop.permute.xlu0 %120
    %v123 = vsub.f32 %v117, %v121
    %v124 = vmax.f32 %v123, 0.0
    %v125 = vadd.f32 %v124, 1e-05
    %v126 = vrsqrt.pop %v125
    %128 = vrot.lane.b32.xlu0 %v126, 96
    %v129 = vpop.permute.xlu0 %128
    %v131 = vmul.f32 %v49, %v129
    %v132 = vmul.f32 %v117, %v131
    %v133 = vsub.f32 %v50, %v132
    %v134 = vlaneseq
    %v135 = vshrl.u32 %v134, 7
    %v136 = vsub.s32 0, %v135
    %v137 = vrot.slane %v131, %v136
    %v138 = vmul.f32 %v98, %v137
    %v139 = vlaneseq
    %v140 = vshrl.u32 %v139, 7
    %v141 = vsub.s32 0, %v140
    %v142 = vrot.slane %v133, %v141
    %v143 = vadd.f32 %v138, %v142
    %v144 = vmax.f32 %v143, 0.0
    %v145 = vpack.c.bf16 %v144, %v144
    %v146 = vpack.c.bf16 %v45, %v44
    %v147 = vpack.c.bf16 %v47, %v46
    %v148 = vlaneseq
    %v149 = vshrl.u32 %v148, 7
    %v150 = vsub.s32 0, %v149
    %v151 = vrot.slane %v51, %v150
    %v153 = vsel %vm59, %v145, 0
    %155 = vmatprep.subr.bf16.mxu0 0
    %156 = vmatpush1.bf16.msra.mxu0 %v146
    %157 = vmatprep.subr.bf16.mxu0 0
    %158 = vmatpush1.bf16.msra.mxu0 %v147
    %159 = vmatprep.subr.bf16.mxu0 0
    %160 = vmatpush1.bf16.msra.mxu0 0
    %161 = vmatprep.subr.bf16.mxu0 0
    %162 = vmatpush1.bf16.msra.mxu0 0
    %163 = vmatprep.subr.bf16.mxu0 0
    %164 = vmatpush1.bf16.msra.mxu0 0
    %165 = vmatprep.subr.bf16.mxu0 0
    %166 = vmatpush1.bf16.msra.mxu0 0
    %167 = vmatprep.subr.bf16.mxu0 0
    %168 = vmatpush1.bf16.msra.mxu0 0
    %169 = vmatprep.subr.bf16.mxu0 0
    %170 = vmatpush1.bf16.msra.mxu0 0
    %171 = vmatprep.subr.bf16.mxu0 0
    %172 = vmatpush1.bf16.msra.mxu0 0
    %173 = vmatprep.subr.bf16.mxu0 0
    %174 = vmatpush1.bf16.msra.mxu0 0
    %175 = vmatprep.subr.bf16.mxu0 0
    %176 = vmatpush1.bf16.msra.mxu0 0
    %177 = vmatprep.subr.bf16.mxu0 0
    %178 = vmatpush1.bf16.msra.mxu0 0
    %179 = vmatprep.subr.bf16.mxu0 0
    %180 = vmatpush1.bf16.msra.mxu0 0
    %181 = vmatprep.subr.bf16.mxu0 0
    %182 = vmatpush1.bf16.msra.mxu0 0
    %183 = vmatprep.subr.bf16.mxu0 0
    %184 = vmatpush1.bf16.msra.mxu0 0
    %185 = vmatprep.subr.bf16.mxu0 0
    %186 = vmatpush1.bf16.msra.mxu0 0
    %187 = vmatprep.mubr.bf16.mxu0 0
    %188 = vmatmul.mubr.bf16.gmra.mrb[0].mxu0 %v153
    %v189 = vpop.f32.mrb[0].mxu0
    %v190 = vadd.f32 %v151, %v189
    %v191 = vpop.f32.mrb[0].mxu0
    %v192 = vpop.f32.mrb[0].mxu0
    %v193 = vpop.f32.mrb[0].mxu0
    %194 = vdwg.mxu0
    %vm195 = vcmask 60416
    %v196 = vsel %vm195, %v190, -inf
    %197 = vmax.xlane.f32.xlu0 %v196
    %v198 = vpop.xlane.xlu0 %197
    %v199 = vsub.f32 %v190, %v198
    %v200 = vmul.f32 %v199, 1.442695
    %v201 = vpow.pop %v200
    %v202 = vsel %vm195, %v201, 0.0
    %203 = vadd.xlane.f32.xlu0 %v202
    %v204 = vpop.xlane.xlu0 %203
    %v205 = vlog2.pop %v204
    %v206 = vmul.f32 %v205, 0.6931472
    %v207 = vadd.f32 %v206, %v198
    %v208 = vsub.f32 %v190, %v207
    %209 = vst.msk [vmem:[#allocation7] sm:$0xf] %vm195, %v208
    // Predicated region
    $region18: #{tpu_custom_call.1} parent=1 // pred_check
      _
    $region19: #{tpu_custom_call.1} parent=1 // pred_check_branch
      %211 = sbr.rel (0) target = $region21
    $region20: #{tpu_custom_call.1} parent=1 // pred_region
      %s213 = ssub.s32 64, 64
      %214 = vsyncadd [#allocation4], %s213
      %s216 = sshll.u32 [#allocation7], 4
      %s217 = int_to_ptr.vmem [resolvable:$true] %s216
      %219 = dma.vmem_to_hbm [thread:$0]  %s217, 64, %s2, [#allocation4]
    $region21: #{tpu_custom_call.1} parent=1 // pred_fallthru
      _
    // Predicated region
    $region22: #{tpu_custom_call.1} parent=1 // pred_check
      _
    $region23: #{tpu_custom_call.1} parent=1 // pred_check_branch
      %221 = sbr.rel (0) target = $region25
    $region24: #{tpu_custom_call.1} parent=1 // pred_region
      %222 = dma.done [#allocation4], 64
    $region25: #{tpu_custom_call.1} parent=1 // pred_fallthru
      _
    %223 = vsyncpa [#allocation3], 1
    %224 = vsyncpa [#allocation6], 1
    %225 = vsyncpa [#allocation4], 1

</llo_original>
